<compile_context>
chip_gen: v7x
topology: tpu7x:2x2x1
jax: 0.10.0
libtpu: 0.0.40
codegen_flags: <defaults>
</compile_context>

<pallas_src>
import jax
import jax.numpy as jnp
from jax import lax
from jax.experimental import pallas as pl
from jax.experimental.pallas import tpu as pltpu


def basic_dec_blk_kernel(x_ref, wb_in_ref, b_in_ref, wb_out_ref, b_out_ref,
                         o_ref):
    """One batch-of-B images per grid step; everything lane-dense (last dim = W*C).

    x_ref     : (B, H, W*C_in)          bf16 input rows flattened as (w, c)
    wb_in_ref : (W*C_in, 3*W*C_mid)     bf16 band weights for conv_in (dh stacked
                                        along columns), BN scale pre-folded
    b_in_ref  : (1, W*C_mid)            f32  folded conv-bias + BN bias
    wb_out_ref: (W*C_mid, 3*W*C_out)    bf16
    b_out_ref : (1, W*C_out)            f32
    o_ref     : (B, H, W*C_out)         f32 output
    """
    B, H, WC_in = x_ref.shape
    WC_mid = wb_in_ref.shape[1] // 3
    WC_out = wb_out_ref.shape[1] // 3
    M = B * H

    # Hoisted per-image H-boundary masks over the batched (B*H) row axis.
    row = lax.broadcasted_iota(jnp.int32, (M, 1), 0)
    not_first = (row % H) != 0          # rows that may receive the h-1 tap
    not_last = (row % H) != (H - 1)     # rows that may receive the h+1 tap

    def conv3x3(x2d, wb_ref, wc):
        # Single MXU matmul against the 3-dh stacked band RHS; the W-direction
        # 'same' padding is baked into the band weights.
        y = jnp.dot(x2d, wb_ref[...], preferred_element_type=jnp.float32)
        y0 = y[:, 0:wc]              # dh = 0 (tap from row h-1)
        y1 = y[:, wc:2 * wc]         # dh = 1 (center)
        y2 = y[:, 2 * wc:3 * wc]     # dh = 2 (tap from row h+1)
        # out[m] = y0[m-1] + y1[m] + y2[m+1], zeroed at per-image H boundaries.
        up = jnp.where(not_first, pltpu.roll(y0, shift=1, axis=0), 0.0)
        dn = jnp.where(not_last, pltpu.roll(y2, shift=M - 1, axis=0), 0.0)
        return up + y1 + dn

    x2d = x_ref[...].reshape(M, WC_in)                   # (B*H, W*C_in) bf16

    # conv_in (BN scale folded into weights) -> bias -> ReLU
    mid = conv3x3(x2d, wb_in_ref, WC_mid)                # (B*H, W*C_mid) f32
    mid = jnp.maximum(mid + b_in_ref[...], 0.0).astype(jnp.bfloat16)

    # conv_out (BN scale folded) -> bias
    out = conv3x3(mid, wb_out_ref, WC_out)               # (B*H, W*C_out) f32
    out = out + b_out_ref[...]
    o_ref[...] = out.reshape(B, H, WC_out)


def _band_weights_fused(w_hwio, W, out_scale):
    """(3,3,Ci,Co) HWIO weights (+ per-Co scale) -> (W*Ci, 3*W*Co) stacked bands.

    band[dh, wp*Ci + ci, w*Co + co] = w[dh, dw, ci, co] * out_scale[co] with
    wp = w + dw - 1 when 0 <= wp < W, else 0 (W-direction 'same' pad baked in).
    The three dh bands are stacked along the output-column axis so one matmul
    produces all three tap results.
    """
    Ci, Co = w_hwio.shape[2], w_hwio.shape[3]
    w_scaled = w_hwio.astype(jnp.float32) * out_scale.astype(jnp.float32)[None, None, None, :]
    p = jnp.arange(W)[None, :, None]          # source column wp
    q = jnp.arange(W)[None, None, :]          # output column w
    d = jnp.arange(3)[:, None, None]          # dw
    sel = (p == q + d - 1).astype(jnp.float32)                       # (3, W, W)
    band = jnp.einsum('dpw,hdio->hpiwo', sel, w_scaled)
    band = band.reshape(3, W * Ci, W * Co)                           # per-dh bands
    # Stack dh along columns: (W*Ci, 3*W*Co); dh slice at column offset dh*W*Co.
    band = jnp.transpose(band, (1, 0, 2)).reshape(W * Ci, 3 * W * Co)
    return band.astype(jnp.bfloat16)


def _pick_images_per_step(N, H, target_m=256):
    """Largest divisor B of N with B*H <= target_m, preferring an even grid."""
    cap = max(1, target_m // H)
    divisors = [b for b in range(1, N + 1) if N % b == 0 and b <= cap]
    even_grid = [b for b in divisors if (N // b) % 2 == 0]
    return max(even_grid) if even_grid else max(divisors)


def basic_dec_blk(x_nchw, params):
    (w_in, b_in, g_in, bt_in, rm_in, rv_in,
     w_out, b_out, g_out, bt_out, rm_out, rv_out) = params
    eps = 1e-5
    N, C_in, H, W = x_nchw.shape
    C_mid = w_in.shape[3]
    C_out = w_out.shape[3]
    WC_in, WC_mid, WC_out = W * C_in, W * C_mid, W * C_out

    # Lane-dense layout assumption: every flattened row must fill whole vregs.
    assert WC_in % 128 == 0 and WC_mid % 128 == 0 and WC_out % 128 == 0, (
        "lane-dense layout requires W*C to be a multiple of 128")
    assert H % 8 == 0, "H must be a multiple of 8 (sublane tiling)"

    # Fold eval-mode BatchNorm: scale goes into the conv weights (in f32,
    # before the bf16 cast), only a per-channel bias stays in the kernel.
    s_in = g_in / jnp.sqrt(rv_in + eps)
    bias_in = jnp.tile((b_in - rm_in) * s_in + bt_in, W).reshape(1, WC_mid)
    bias_in = bias_in.astype(jnp.float32)
    s_out = g_out / jnp.sqrt(rv_out + eps)
    bias_out = jnp.tile((b_out - rm_out) * s_out + bt_out, W).reshape(1, WC_out)
    bias_out = bias_out.astype(jnp.float32)

    wb_in = _band_weights_fused(w_in, W, s_in)      # (W*C_in,  3*W*C_mid) bf16
    wb_out = _band_weights_fused(w_out, W, s_out)   # (W*C_mid, 3*W*C_out) bf16

    # NCHW -> lane-dense (N, H, W*C) bf16.  No spatial pre-padding needed (the
    # W pad is in the band weights, the H pad is handled inside the kernel).
    x = jnp.transpose(x_nchw, (0, 2, 3, 1)).reshape(N, H, WC_in)
    x = x.astype(jnp.bfloat16)

    # Batch B images per grid step so each matmul has M = B*H rows; keep the
    # grid even so v7x can shard it across its two TensorCores.
    B = _pick_images_per_step(N, H)
    steps = N // B

    out = pl.pallas_call(
        basic_dec_blk_kernel,
        out_shape=jax.ShapeDtypeStruct((N, H, WC_out), jnp.float32),
        grid_spec=pltpu.PrefetchScalarGridSpec(
            num_scalar_prefetch=0,
            grid=(steps,),
            in_specs=[
                pl.BlockSpec((B, H, WC_in), lambda n: (n, 0, 0)),
                # Constant index maps: weights / biases stay VMEM-resident
                # across grid steps (no per-step re-DMA).
                pl.BlockSpec((WC_in, 3 * WC_mid), lambda n: (0, 0)),
                pl.BlockSpec((1, WC_mid), lambda n: (0, 0)),
                pl.BlockSpec((WC_mid, 3 * WC_out), lambda n: (0, 0)),
                pl.BlockSpec((1, WC_out), lambda n: (0, 0)),
            ],
            out_specs=pl.BlockSpec((B, H, WC_out), lambda n: (n, 0, 0)),
        ),
        compiler_params=pltpu.CompilerParams(
            dimension_semantics=("parallel",)),
    )(x, wb_in, bias_in, wb_out, bias_out)

    out = out.reshape(N, H, W, C_out)
    return jnp.transpose(out, (0, 3, 1, 2))             # back to NCHW


def reference_forward(x_nchw, params):
    """Pure-JAX reference matching PyTorch semantics (NCHW, eval-mode BN)."""
    (w_in, b_in, g_in, bt_in, rm_in, rv_in,
     w_out, b_out, g_out, bt_out, rm_out, rv_out) = params
    eps = 1e-5

    def conv(x, w_hwio, b):
        y = lax.conv_general_dilated(
            x, w_hwio, window_strides=(1, 1), padding='SAME',
            dimension_numbers=('NCHW', 'HWIO', 'NCHW'),
            precision=lax.Precision.HIGHEST)
        return y + b[None, :, None, None]

    def bn(x, g, bt, rm, rv):
        return ((x - rm[None, :, None, None])
                / jnp.sqrt(rv + eps)[None, :, None, None]
                * g[None, :, None, None] + bt[None, :, None, None])

    y = conv(x_nchw, w_in, b_in)
    y = bn(y, g_in, bt_in, rm_in, rv_in)
    y = jnp.maximum(y, 0.0)
    y = conv(y, w_out, b_out)
    y = bn(y, g_out, bt_out, rm_out, rv_out)
    return y


if __name__ == "__main__":
    # Small shapes consistent with the module's forward; W*C = 128 (lane-dense),
    # N=8 so each of the 2 grid steps batches 4 images (M = 64 per matmul).
    N, C_in, C_mid, C_out, H, W = 8, 8, 8, 8, 16, 16

    key = jax.random.PRNGKey(0)
    ks = jax.random.split(key, 13)

    x = jax.random.normal(ks[0], (N, C_in, H, W), jnp.float32)

    # conv_in / conv_out weights in HWIO layout.
    w_in = 0.1 * jax.random.normal(ks[1], (3, 3, C_in, C_mid), jnp.float32)
    b_in = 0.05 * jax.random.normal(ks[2], (C_mid,), jnp.float32)
    g_in = 0.5 + jax.random.uniform(ks[3], (C_mid,), jnp.float32)
    bt_in = 0.05 * jax.random.normal(ks[4], (C_mid,), jnp.float32)
    rm_in = 0.05 * jax.random.normal(ks[5], (C_mid,), jnp.float32)
    rv_in = 0.5 + jax.random.uniform(ks[6], (C_mid,), jnp.float32)

    w_out = 0.1 * jax.random.normal(ks[7], (3, 3, C_mid, C_out), jnp.float32)
    b_out = 0.05 * jax.random.normal(ks[8], (C_out,), jnp.float32)
    g_out = 0.5 + jax.random.uniform(ks[9], (C_out,), jnp.float32)
    bt_out = 0.05 * jax.random.normal(ks[10], (C_out,), jnp.float32)
    rm_out = 0.05 * jax.random.normal(ks[11], (C_out,), jnp.float32)
    rv_out = 0.5 + jax.random.uniform(ks[12], (C_out,), jnp.float32)

    params = (w_in, b_in, g_in, bt_in, rm_in, rv_in,
              w_out, b_out, g_out, bt_out, rm_out, rv_out)

    out = jax.block_until_ready(basic_dec_blk(x, params))
    ref = jax.block_until_ready(reference_forward(x, params))

    assert out.shape == (N, C_out, H, W)
    # Tightened tolerances: bf16 MXU inputs, f32 accumulation/epilogue -> the
    # error budget is well under 1% relative; band-weight regressions would trip.
    max_err = float(jnp.max(jnp.abs(out - ref)))
    ref_scale = float(jnp.max(jnp.abs(ref)))
    l2_rel = float(jnp.linalg.norm(out - ref) / (jnp.linalg.norm(ref) + 1e-12))
    assert max_err <= 0.02 * ref_scale + 1e-3, (
        f"max abs diff {max_err} vs ref scale {ref_scale}")
    assert l2_rel <= 0.01, f"relative L2 error {l2_rel}"

    print("KERNEL_OK")
</pallas_src>

<mosaic_0001>
module attributes {stable_mosaic.version = 11 : i64} {
  func.func @basic_dec_blk_kernel(%arg0: i32, %arg1: memref<4x16x128xbf16, #tpu.memory_space<vmem>>, %arg2: memref<128x384xbf16, #tpu.memory_space<vmem>>, %arg3: memref<1x128xf32, #tpu.memory_space<vmem>>, %arg4: memref<128x384xbf16, #tpu.memory_space<vmem>>, %arg5: memref<1x128xf32, #tpu.memory_space<vmem>>, %arg6: memref<4x16x128xf32, #tpu.memory_space<vmem>>) attributes {dimension_semantics = [#tpu.dimension_semantics<parallel>], iteration_bounds = array<i64: 2>, scalar_prefetch = 0 : i64, scratch_operands = 0 : i64, tpu.core_type = #tpu.core_type<tc>, window_params = [{transform_indices = @transform_0, window_bounds = array<i64: 4, 16, 128>}, {pipeline_mode = #tpu.pipeline_mode<synchronous>, transform_indices = @transform_1, window_bounds = array<i64: 128, 384>}, {pipeline_mode = #tpu.pipeline_mode<synchronous>, transform_indices = @transform_2, window_bounds = array<i64: 1, 128>}, {pipeline_mode = #tpu.pipeline_mode<synchronous>, transform_indices = @transform_3, window_bounds = array<i64: 128, 384>}, {pipeline_mode = #tpu.pipeline_mode<synchronous>, transform_indices = @transform_4, window_bounds = array<i64: 1, 128>}, {transform_indices = @transform_5, window_bounds = array<i64: 4, 16, 128>}]} {
    %0 = tpu.iota {dimensions = array<i32: 0>} : vector<64x1xi32>
    %c16_i32 = arith.constant 16 : i32
    %c0_i32 = arith.constant 0 : i32
    %1 = arith.cmpi eq, %c16_i32, %c0_i32 : i32
    %c1_i32 = arith.constant 1 : i32
    %2 = arith.select %1, %c1_i32, %c16_i32 : i32
    %3 = vector.broadcast %2 : i32 to vector<64x1xi32>
    %4 = arith.remsi %0, %3 : vector<64x1xi32>
    %c0_i32_0 = arith.constant 0 : i32
    %5 = vector.broadcast %c0_i32_0 : i32 to vector<64x1xi32>
    %6 = arith.cmpi ne, %4, %5 : vector<64x1xi32>
    %c0_i32_1 = arith.constant 0 : i32
    %7 = vector.broadcast %c0_i32_1 : i32 to vector<64x1xi32>
    %8 = arith.cmpi slt, %4, %7 : vector<64x1xi32>
    %c0_i32_2 = arith.constant 0 : i32
    %9 = arith.cmpi slt, %2, %c0_i32_2 : i32
    %10 = vector.broadcast %9 : i1 to vector<64x1xi1>
    %11 = vector.broadcast %10 : vector<64x1xi1> to vector<64x1xi1>
    %12 = arith.xori %8, %11 : vector<64x1xi1>
    %13 = arith.andi %12, %6 : vector<64x1xi1>
    %14 = vector.broadcast %2 : i32 to vector<64x1xi32>
    %15 = arith.addi %4, %14 : vector<64x1xi32>
    %16 = arith.select %13, %15, %4 : vector<64x1xi1>, vector<64x1xi32>
    %c0_i32_3 = arith.constant 0 : i32
    %17 = vector.broadcast %c0_i32_3 : i32 to vector<64x1xi32>
    %18 = arith.cmpi ne, %16, %17 : vector<64x1xi32>
    %c16_i32_4 = arith.constant 16 : i32
    %c0_i32_5 = arith.constant 0 : i32
    %19 = arith.cmpi eq, %c16_i32_4, %c0_i32_5 : i32
    %c1_i32_6 = arith.constant 1 : i32
    %20 = arith.select %19, %c1_i32_6, %c16_i32_4 : i32
    %21 = vector.broadcast %20 : i32 to vector<64x1xi32>
    %22 = arith.remsi %0, %21 : vector<64x1xi32>
    %c0_i32_7 = arith.constant 0 : i32
    %23 = vector.broadcast %c0_i32_7 : i32 to vector<64x1xi32>
    %24 = arith.cmpi ne, %22, %23 : vector<64x1xi32>
    %c0_i32_8 = arith.constant 0 : i32
    %25 = vector.broadcast %c0_i32_8 : i32 to vector<64x1xi32>
    %26 = arith.cmpi slt, %22, %25 : vector<64x1xi32>
    %c0_i32_9 = arith.constant 0 : i32
    %27 = arith.cmpi slt, %20, %c0_i32_9 : i32
    %28 = vector.broadcast %27 : i1 to vector<64x1xi1>
    %29 = vector.broadcast %28 : vector<64x1xi1> to vector<64x1xi1>
    %30 = arith.xori %26, %29 : vector<64x1xi1>
    %31 = arith.andi %30, %24 : vector<64x1xi1>
    %32 = vector.broadcast %20 : i32 to vector<64x1xi32>
    %33 = arith.addi %22, %32 : vector<64x1xi32>
    %34 = arith.select %31, %33, %22 : vector<64x1xi1>, vector<64x1xi32>
    %c15_i32 = arith.constant 15 : i32
    %35 = vector.broadcast %c15_i32 : i32 to vector<64x1xi32>
    %36 = arith.cmpi ne, %34, %35 : vector<64x1xi32>
    %c0 = arith.constant 0 : index
    %c0_10 = arith.constant 0 : index
    %c0_11 = arith.constant 0 : index
    %37 = vector.load %arg1[%c0, %c0_10, %c0_11] : memref<4x16x128xbf16, #tpu.memory_space<vmem>>, vector<4x16x128xbf16>
    %38 = vector.shape_cast %37 : vector<4x16x128xbf16> to vector<64x128xbf16>
    %c0_12 = arith.constant 0 : index
    %c0_13 = arith.constant 0 : index
    %39 = vector.load %arg2[%c0_12, %c0_13] : memref<128x384xbf16, #tpu.memory_space<vmem>>, vector<128x384xbf16>
    %cst = arith.constant dense<0.000000e+00> : vector<64x384xf32>
    %40 = tpu.matmul %38, %39, %cst {dimension_numbers = #tpu.dot_dimension_numbers<[1], [0], [0], [1], [0, 0, 1, 1], [], []>} : vector<64x128xbf16>, vector<128x384xbf16>, vector<64x384xf32> -> vector<64x384xf32>
    %41 = vector.extract_strided_slice %40 {offsets = [0, 0], sizes = [64, 128], strides = [1, 1]} : vector<64x384xf32> to vector<64x128xf32>
    %42 = vector.extract_strided_slice %40 {offsets = [0, 128], sizes = [64, 128], strides = [1, 1]} : vector<64x384xf32> to vector<64x128xf32>
    %43 = vector.extract_strided_slice %40 {offsets = [0, 256], sizes = [64, 128], strides = [1, 1]} : vector<64x384xf32> to vector<64x128xf32>
    %c1_i32_14 = arith.constant 1 : i32
    %44 = tpu.dynamic_rotate %41 by %c1_i32_14 dim 0 : vector<64x128xf32>, i32 -> vector<64x128xf32>
    %cst_15 = arith.constant 0.000000e+00 : f32
    %45 = vector.shape_cast %18 : vector<64x1xi1> to vector<64x1xi1>
    %46 = vector.broadcast %45 : vector<64x1xi1> to vector<64x128xi1>
    %47 = vector.broadcast %cst_15 : f32 to vector<64x128xf32>
    %48 = arith.select %46, %44, %47 : vector<64x128xi1>, vector<64x128xf32>
    %c63_i32 = arith.constant 63 : i32
    %49 = tpu.dynamic_rotate %43 by %c63_i32 dim 0 : vector<64x128xf32>, i32 -> vector<64x128xf32>
    %cst_16 = arith.constant 0.000000e+00 : f32
    %50 = vector.shape_cast %36 : vector<64x1xi1> to vector<64x1xi1>
    %51 = vector.broadcast %50 : vector<64x1xi1> to vector<64x128xi1>
    %52 = vector.broadcast %cst_16 : f32 to vector<64x128xf32>
    %53 = arith.select %51, %49, %52 : vector<64x128xi1>, vector<64x128xf32>
    %54 = arith.addf %48, %42 : vector<64x128xf32>
    %55 = arith.addf %54, %53 : vector<64x128xf32>
    %c0_17 = arith.constant 0 : index
    %c0_18 = arith.constant 0 : index
    %56 = vector.load %arg3[%c0_17, %c0_18] : memref<1x128xf32, #tpu.memory_space<vmem>>, vector<1x128xf32>
    %57 = vector.broadcast %56 : vector<1x128xf32> to vector<64x128xf32>
    %58 = arith.addf %55, %57 : vector<64x128xf32>
    %cst_19 = arith.constant 0.000000e+00 : f32
    %59 = vector.broadcast %cst_19 : f32 to vector<64x128xf32>
    %60 = arith.maximumf %58, %59 : vector<64x128xf32>
    %61 = arith.truncf %60 : vector<64x128xf32> to vector<64x128xbf16>
    %c0_20 = arith.constant 0 : index
    %c0_21 = arith.constant 0 : index
    %62 = vector.load %arg4[%c0_20, %c0_21] : memref<128x384xbf16, #tpu.memory_space<vmem>>, vector<128x384xbf16>
    %cst_22 = arith.constant dense<0.000000e+00> : vector<64x384xf32>
    %63 = tpu.matmul %61, %62, %cst_22 {dimension_numbers = #tpu.dot_dimension_numbers<[1], [0], [0], [1], [0, 0, 1, 1], [], []>} : vector<64x128xbf16>, vector<128x384xbf16>, vector<64x384xf32> -> vector<64x384xf32>
    %64 = vector.extract_strided_slice %63 {offsets = [0, 0], sizes = [64, 128], strides = [1, 1]} : vector<64x384xf32> to vector<64x128xf32>
    %65 = vector.extract_strided_slice %63 {offsets = [0, 128], sizes = [64, 128], strides = [1, 1]} : vector<64x384xf32> to vector<64x128xf32>
    %66 = vector.extract_strided_slice %63 {offsets = [0, 256], sizes = [64, 128], strides = [1, 1]} : vector<64x384xf32> to vector<64x128xf32>
    %c1_i32_23 = arith.constant 1 : i32
    %67 = tpu.dynamic_rotate %64 by %c1_i32_23 dim 0 : vector<64x128xf32>, i32 -> vector<64x128xf32>
    %cst_24 = arith.constant 0.000000e+00 : f32
    %68 = vector.shape_cast %18 : vector<64x1xi1> to vector<64x1xi1>
    %69 = vector.broadcast %68 : vector<64x1xi1> to vector<64x128xi1>
    %70 = vector.broadcast %cst_24 : f32 to vector<64x128xf32>
    %71 = arith.select %69, %67, %70 : vector<64x128xi1>, vector<64x128xf32>
    %c63_i32_25 = arith.constant 63 : i32
    %72 = tpu.dynamic_rotate %66 by %c63_i32_25 dim 0 : vector<64x128xf32>, i32 -> vector<64x128xf32>
    %cst_26 = arith.constant 0.000000e+00 : f32
    %73 = vector.shape_cast %36 : vector<64x1xi1> to vector<64x1xi1>
    %74 = vector.broadcast %73 : vector<64x1xi1> to vector<64x128xi1>
    %75 = vector.broadcast %cst_26 : f32 to vector<64x128xf32>
    %76 = arith.select %74, %72, %75 : vector<64x128xi1>, vector<64x128xf32>
    %77 = arith.addf %71, %65 : vector<64x128xf32>
    %78 = arith.addf %77, %76 : vector<64x128xf32>
    %c0_27 = arith.constant 0 : index
    %c0_28 = arith.constant 0 : index
    %79 = vector.load %arg5[%c0_27, %c0_28] : memref<1x128xf32, #tpu.memory_space<vmem>>, vector<1x128xf32>
    %80 = vector.broadcast %79 : vector<1x128xf32> to vector<64x128xf32>
    %81 = arith.addf %78, %80 : vector<64x128xf32>
    %82 = vector.shape_cast %81 : vector<64x128xf32> to vector<4x16x128xf32>
    %c0_29 = arith.constant 0 : index
    %c0_30 = arith.constant 0 : index
    %c0_31 = arith.constant 0 : index
    %83 = vector.load %arg6[%c0_29, %c0_30, %c0_31] : memref<4x16x128xf32, #tpu.memory_space<vmem>>, vector<4x16x128xf32>
    tpu.vector_store %arg6[%c0_29, %c0_30, %c0_31], %82 {strides = array<i32>} : memref<4x16x128xf32, #tpu.memory_space<vmem>>, vector<4x16x128xf32>,
    return
  }
  func.func @transform_0(%arg0: i32) -> (i32, i32, i32) {
    %c0_i32 = arith.constant 0 : i32
    %c0_i32_0 = arith.constant 0 : i32
    %c0_i32_1 = arith.constant 0 : i32
    return %arg0, %c0_i32, %c0_i32_0 : i32, i32, i32
  }
  func.func @transform_1(%arg0: i32) -> (i32, i32) {
    %c0_i32 = arith.constant 0 : i32
    %c0_i32_0 = arith.constant 0 : i32
    %c0_i32_1 = arith.constant 0 : i32
    return %c0_i32, %c0_i32_0 : i32, i32
  }
  func.func @transform_2(%arg0: i32) -> (i32, i32) {
    %c0_i32 = arith.constant 0 : i32
    %c0_i32_0 = arith.constant 0 : i32
    %c0_i32_1 = arith.constant 0 : i32
    return %c0_i32, %c0_i32_0 : i32, i32
  }
  func.func @transform_3(%arg0: i32) -> (i32, i32) {
    %c0_i32 = arith.constant 0 : i32
    %c0_i32_0 = arith.constant 0 : i32
    %c0_i32_1 = arith.constant 0 : i32
    return %c0_i32, %c0_i32_0 : i32, i32
  }
  func.func @transform_4(%arg0: i32) -> (i32, i32) {
    %c0_i32 = arith.constant 0 : i32
    %c0_i32_0 = arith.constant 0 : i32
    %c0_i32_1 = arith.constant 0 : i32
    return %c0_i32, %c0_i32_0 : i32, i32
  }
  func.func @transform_5(%arg0: i32) -> (i32, i32, i32) {
    %c0_i32 = arith.constant 0 : i32
    %c0_i32_0 = arith.constant 0 : i32
    %c0_i32_1 = arith.constant 0 : i32
    return %arg0, %c0_i32, %c0_i32_0 : i32, i32, i32
  }
}

</mosaic_0001>

<llo_original>
// kernel: tpu_custom_call.1
$region0: #{tpu_custom_call.1}
  #allocation0 [shape = 'u32[]', space=smem, size = 0x4, offset = 0x4, fixed_abs, tag = 'smem constant byte address 0x4 - core index']
  #allocation1 [shape = 'u32[144,128]{1,0:T(1,128)}', space=vmem, size = 0x12000, scoped, tag = 'internal scratch']
  %s0 = inlined_call_operand.hbm [shape: bf16[8,16,128], index: 0, kind: input, shape index: {}]
  %s1 = inlined_call_operand.hbm [shape: bf16[128,384], index: 1, kind: input, shape index: {}]
  %s2 = inlined_call_operand.vmem [shape: f32[1,128], index: 2, kind: input, shape index: {}]
  %s3 = inlined_call_operand.hbm [shape: bf16[128,384], index: 3, kind: input, shape index: {}]
  %s4 = inlined_call_operand.vmem [shape: f32[1,128], index: 4, kind: input, shape index: {}]
  %s5 = inlined_call_operand.hbm [shape: f32[8,16,128], index: 5, kind: output, shape index: {}]
  %s6 = sld [smem:[#allocation0]]
  $region65: #{tpu_custom_call.1} parent=0
    _
  %s8 = ssub.s32 1, %s6
  %s9 = scalar_select 0, %s8, %s6
  $region1: #{tpu_custom_call.1} parent=0
    #allocation2 [shape = 'u8[32768]{0}', space=vmem, size = 0x8000, scoped, tag = 'input window, operand 0']
    #allocation3 [shape = 's32[2]{0}', space=sflag, size = 0x8, scoped, tag = 'scoped memory for tpu_custom_call.1']
    #allocation4 [shape = 's32[2]{0}', space=sflag, size = 0x8, scoped, tag = 'scoped memory for tpu_custom_call.1']
    #allocation5 [shape = 'u8[98304]{0}', space=vmem, size = 0x18000, scoped, tag = 'input window, operand 1, single buffered']
    #allocation6 [shape = 's32[1]{0}', space=sflag, size = 0x4, scoped, tag = 'scoped memory for tpu_custom_call.1']
    #allocation7 [shape = 'u8[98304]{0}', space=vmem, size = 0x18000, scoped, tag = 'input window, operand 3, single buffered']
    #allocation8 [shape = 'u8[65536]{0}', space=vmem, size = 0x10000, scoped, tag = 'output window, operand 0']
    %10 = vsyncpa [#allocation3], 0
    %s11 = scalar_lea.sflag [#allocation3], 1
    %12 = vsyncpa %s11, 0
    %13 = vsyncpa [#allocation6], 0
    %14 = vsyncpa [#allocation4], 0
    %s15 = scalar_lea.sflag [#allocation4], 1
    %16 = vsyncpa %s15, 0
    loop: start=0, step=1, limit=4
    $region2: #{tpu_custom_call.1} parent=1 // loop_pre_header
      _
    $region3: #{tpu_custom_call.1} parent=1 // loop_header
      %s18 = sphi 0, %s22
      %p19 = scmp.ge.s32.totalorder %s18, 4
      %s28 = sphi 0, %s30
      %s31 = sphi 0, %s28
      %s32 = sphi 0, %s31
      %s48 = sphi 0, %s32
      %s52 = sphi 0, %s52
      %s54 = sphi 0, %s52
      %s55 = sphi 0, %s54
      %s69 = sphi 0, %s55
      %s73 = sphi 0, %s73
      %s75 = sphi 0, %s73
      %s76 = sphi 0, %s75
      %s90 = sphi 0, %s76
      %s94 = sphi 0, %s94
      %s96 = sphi 0, %s94
      %s97 = sphi 0, %s96
      %s111 = sphi 0, %s97
      %s115 = sphi 0, %s115
      %s117 = sphi 0, %s115
      %s118 = sphi 0, %s117
      %s132 = sphi 0, %s118
      %s138 = sphi 0, %s140
      %s141 = sphi 0, %s138
      %s142 = sphi 0, %s141
      %s158 = sphi 0, %s142
    $region4: #{tpu_custom_call.1} parent=1 // loop_header_branch
      %21 = sbr.rel (%p19) target = $region8
    $region5: #{tpu_custom_call.1} parent=1 // loop_body
      %s23 = ssub.s32 %s18, 1
      %s24 = ssub.s32 %s18, 2
      %s25 = sadd.s32 %s18, 1
      %s26 = ssub.s32 %s18, %s25
      %p27 = scmp.eq.s32.totalorder %s26, 0
      %s29 = sadd.s32 %s28, 1
      %s30 = scalar_select %p27, %s28, %s29
      %p33 = pneg %p27
      %p34 = scmp.eq.s32.totalorder %s18, 1
      %p35 = por %p33, %p34
      %p36 = scmp.ne.s32.totalorder %s28, %s31
      %p37 = scmp.eq.s32.totalorder %s18, 0
      %p38 = por %p36, %p37
      %p39 = scmp.ne.s32.totalorder %s28, %s31
      %p40 = scmp.eq.s32.totalorder %s23, 1
      %p41 = por %p39, %p40
      %p42 = scmp.ne.s32.totalorder %s31, %s32
      %p43 = scmp.eq.s32.totalorder %s23, 0
      %p44 = por %p42, %p43
      %p45 = scmp.ne.s32.totalorder %s31, %s32
      %p46 = scmp.eq.s32.totalorder %s24, 1
      %p47 = por %p45, %p46
      %p49 = scmp.ne.s32.totalorder %s32, %s48
      %p50 = scmp.eq.s32.totalorder %s24, 0
      %p51 = por %p49, %p50
      %s53 = sadd.s32 %s52, 1
      %p56 = scmp.eq.s32.totalorder %s18, 1
      %p57 = scmp.ne.s32.totalorder %s52, %s54
      %p58 = scmp.eq.s32.totalorder %s18, 0
      %p59 = por %p57, %p58
      %p60 = scmp.ne.s32.totalorder %s52, %s54
      %p61 = scmp.eq.s32.totalorder %s23, 1
      %p62 = por %p60, %p61
      %p63 = scmp.ne.s32.totalorder %s54, %s55
      %p64 = scmp.eq.s32.totalorder %s23, 0
      %p65 = por %p63, %p64
      %p66 = scmp.ne.s32.totalorder %s54, %s55
      %p67 = scmp.eq.s32.totalorder %s24, 1
      %p68 = por %p66, %p67
      %p70 = scmp.ne.s32.totalorder %s55, %s69
      %p71 = scmp.eq.s32.totalorder %s24, 0
      %p72 = por %p70, %p71
      %s74 = sadd.s32 %s73, 1
      %p77 = scmp.eq.s32.totalorder %s18, 1
      %p78 = scmp.ne.s32.totalorder %s73, %s75
      %p79 = scmp.eq.s32.totalorder %s18, 0
      %p80 = por %p78, %p79
      %p81 = scmp.ne.s32.totalorder %s73, %s75
      %p82 = scmp.eq.s32.totalorder %s23, 1
      %p83 = por %p81, %p82
      %p84 = scmp.ne.s32.totalorder %s75, %s76
      %p85 = scmp.eq.s32.totalorder %s23, 0
      %p86 = por %p84, %p85
      %p87 = scmp.ne.s32.totalorder %s75, %s76
      %p88 = scmp.eq.s32.totalorder %s24, 1
      %p89 = por %p87, %p88
      %p91 = scmp.ne.s32.totalorder %s76, %s90
      %p92 = scmp.eq.s32.totalorder %s24, 0
      %p93 = por %p91, %p92
      %s95 = sadd.s32 %s94, 1
      %p98 = scmp.eq.s32.totalorder %s18, 1
      %p99 = scmp.ne.s32.totalorder %s94, %s96
      %p100 = scmp.eq.s32.totalorder %s18, 0
      %p101 = por %p99, %p100
      %p102 = scmp.ne.s32.totalorder %s94, %s96
      %p103 = scmp.eq.s32.totalorder %s23, 1
      %p104 = por %p102, %p103
      %p105 = scmp.ne.s32.totalorder %s96, %s97
      %p106 = scmp.eq.s32.totalorder %s23, 0
      %p107 = por %p105, %p106
      %p108 = scmp.ne.s32.totalorder %s96, %s97
      %p109 = scmp.eq.s32.totalorder %s24, 1
      %p110 = por %p108, %p109
      %p112 = scmp.ne.s32.totalorder %s97, %s111
      %p113 = scmp.eq.s32.totalorder %s24, 0
      %p114 = por %p112, %p113
      %s116 = sadd.s32 %s115, 1
      %p119 = scmp.eq.s32.totalorder %s18, 1
      %p120 = scmp.ne.s32.totalorder %s115, %s117
      %p121 = scmp.eq.s32.totalorder %s18, 0
      %p122 = por %p120, %p121
      %p123 = scmp.ne.s32.totalorder %s115, %s117
      %p124 = scmp.eq.s32.totalorder %s23, 1
      %p125 = por %p123, %p124
      %p126 = scmp.ne.s32.totalorder %s117, %s118
      %p127 = scmp.eq.s32.totalorder %s23, 0
      %p128 = por %p126, %p127
      %p129 = scmp.ne.s32.totalorder %s117, %s118
      %p130 = scmp.eq.s32.totalorder %s24, 1
      %p131 = por %p129, %p130
      %p133 = scmp.ne.s32.totalorder %s118, %s132
      %p134 = scmp.eq.s32.totalorder %s24, 0
      %p135 = por %p133, %p134
      %s136 = ssub.s32 %s18, %s25
      %p137 = scmp.eq.s32.totalorder %s136, 0
      %s139 = sadd.s32 %s138, 1
      %s140 = scalar_select %p137, %s138, %s139
      %p143 = pneg %p137
      %p144 = scmp.eq.s32.totalorder %s18, 1
      %p145 = por %p143, %p144
      %p146 = scmp.ne.s32.totalorder %s138, %s141
      %p147 = scmp.eq.s32.totalorder %s18, 0
      %p148 = por %p146, %p147
      %p149 = scmp.ne.s32.totalorder %s138, %s141
      %p150 = scmp.eq.s32.totalorder %s23, 1
      %p151 = por %p149, %p150
      %p152 = scmp.ne.s32.totalorder %s141, %s142
      %p153 = scmp.eq.s32.totalorder %s23, 0
      %p154 = por %p152, %p153
      %p155 = scmp.ne.s32.totalorder %s141, %s142
      %p156 = scmp.eq.s32.totalorder %s24, 1
      %p157 = por %p155, %p156
      %p159 = scmp.ne.s32.totalorder %s142, %s158
      %p160 = scmp.eq.s32.totalorder %s24, 0
      %p161 = por %p159, %p160
      %p162 = scmp.le.s32.totalorder 1, %s18
      %p163 = scmp.lt.s32.totalorder %s18, 3
      %p164 = pnand %p162, %p163
      %p165 = pneg %p164
      // Predicated region
      $region9: #{tpu_custom_call.1} parent=5 // pred_check
        _
      $region10: #{tpu_custom_call.1} parent=5 // pred_check_branch
        %167 = sbr.rel (%p164) target = $region12
      $region11: #{tpu_custom_call.1} parent=5 // pred_region
        %s168 = ssub.s32 %s18, 1
        // Predicated region
        $region13: #{tpu_custom_call.1} parent=11 // pred_check
          %p169 = pneg %p65
        $region14: #{tpu_custom_call.1} parent=11 // pred_check_branch
          %171 = sbr.rel (%p169) target = $region16
        $region15: #{tpu_custom_call.1} parent=11 // pred_region
          %s173 = ssub.s32 3072, 3072
          %174 = vsyncadd [#allocation6], %s173
          %s175 = sshll.u32 [#allocation5], 4
          %s176 = int_to_ptr.vmem [resolvable:$true] %s175
          %181 = dma.hbm_to_vmem [thread:$0]  %s1, 3072, %s176, [#allocation6], 192, 192, 12
        $region16: #{tpu_custom_call.1} parent=11 // pred_fallthru
          _
        // Predicated region
        $region17: #{tpu_custom_call.1} parent=11 // pred_check
          %p182 = pneg %p86
        $region18: #{tpu_custom_call.1} parent=11 // pred_check_branch
          %184 = sbr.rel (%p182) target = $region20
        $region19: #{tpu_custom_call.1} parent=11 // pred_region
          _
        $region20: #{tpu_custom_call.1} parent=11 // pred_fallthru
          _
        // Predicated region
        $region21: #{tpu_custom_call.1} parent=11 // pred_check
          %p185 = pneg %p107
        $region22: #{tpu_custom_call.1} parent=11 // pred_check_branch
          %187 = sbr.rel (%p185) target = $region24
        $region23: #{tpu_custom_call.1} parent=11 // pred_region
          %s189 = ssub.s32 3072, 3072
          %190 = vsyncadd [#allocation6], %s189
          %s191 = sshll.u32 [#allocation7], 4
          %s192 = int_to_ptr.vmem [resolvable:$true] %s191
          %197 = dma.hbm_to_vmem [thread:$0]  %s3, 3072, %s192, [#allocation6], 192, 192, 12
        $region24: #{tpu_custom_call.1} parent=11 // pred_fallthru
          _
        // Predicated region
        $region25: #{tpu_custom_call.1} parent=11 // pred_check
          %p198 = pneg %p128
        $region26: #{tpu_custom_call.1} parent=11 // pred_check_branch
          %200 = sbr.rel (%p198) target = $region28
        $region27: #{tpu_custom_call.1} parent=11 // pred_region
          _
        $region28: #{tpu_custom_call.1} parent=11 // pred_fallthru
          _
      $region12: #{tpu_custom_call.1} parent=5 // pred_fallthru
        _
      %p201 = scmp.lt.s32.totalorder %s18, 2
      // Predicated region
      $region29: #{tpu_custom_call.1} parent=5 // pred_check
        %p202 = pneg %p201
      $region30: #{tpu_custom_call.1} parent=5 // pred_check_branch
        %204 = sbr.rel (%p202) target = $region32
      $region31: #{tpu_custom_call.1} parent=5 // pred_region
        // Predicated region
        $region33: #{tpu_custom_call.1} parent=31 // pred_check
          %p205 = pneg %p38
        $region34: #{tpu_custom_call.1} parent=31 // pred_check_branch
          %207 = sbr.rel (%p205) target = $region36
        $region35: #{tpu_custom_call.1} parent=31 // pred_region
          %s208 = sand.u32 %s28, 1
          %s209 = scalar_lea.sflag [#allocation3], %s208
          %s210 = sand.u32 %s28, 1
          %s211 = smul.addr %s210, 32
          %s212 = scalar_lea.vmem [#allocation2], %s211
          %s213 = smul.u32 4, %s18
          %s215 = ssub.s32 512, 512
          %216 = vsyncadd %s209, %s215
          %s217 = smul.addr %s213, 2
          %s218 = smul.addr %s217, 64
          %s219 = scalar_lea.hbm %s0, %s218
          %s220 = sshll.u32 %s212, 4
          %s221 = int_to_ptr.vmem [resolvable:$true] %s220
          %226 = dma.hbm_to_vmem [thread:$0]  %s219, 512, %s221, %s209, 64, 64, 4
        $region36: #{tpu_custom_call.1} parent=31 // pred_fallthru
          _
      $region32: #{tpu_custom_call.1} parent=5 // pred_fallthru
        _
      %p227 = scmp.le.s32.totalorder 1, %s18
      %p228 = scmp.lt.s32.totalorder %s18, 3
      %p229 = pnand %p227, %p228
      %p230 = pneg %p229
      // Predicated region
      $region37: #{tpu_custom_call.1} parent=5 // pred_check
        _
      $region38: #{tpu_custom_call.1} parent=5 // pred_check_branch
        %232 = sbr.rel (%p229) target = $region40
      $region39: #{tpu_custom_call.1} parent=5 // pred_region
        %s233 = ssub.s32 %s18, 1
        %s234 = sand.u32 %s31, 1
        %s235 = scalar_lea.sflag [#allocation3], %s234
        %s236 = sand.u32 %s31, 1
        %s237 = smul.addr %s236, 32
        %s238 = scalar_lea.vmem [#allocation2], %s237
        // Predicated region
        $region41: #{tpu_custom_call.1} parent=39 // pred_check
          %p239 = pneg %p44
        $region42: #{tpu_custom_call.1} parent=39 // pred_check_branch
          %241 = sbr.rel (%p239) target = $region44
        $region43: #{tpu_custom_call.1} parent=39 // pred_region
          %242 = dma.done %s235, 512
        $region44: #{tpu_custom_call.1} parent=39 // pred_fallthru
          _
        // Predicated region
        $region45: #{tpu_custom_call.1} parent=39 // pred_check
          %p243 = pneg %p65
        $region46: #{tpu_custom_call.1} parent=39 // pred_check_branch
          %245 = sbr.rel (%p243) target = $region48
        $region47: #{tpu_custom_call.1} parent=39 // pred_region
          %246 = dma.done [#allocation6], 3072
        $region48: #{tpu_custom_call.1} parent=39 // pred_fallthru
          _
        // Predicated region
        $region49: #{tpu_custom_call.1} parent=39 // pred_check
          %p247 = pneg %p107
        $region50: #{tpu_custom_call.1} parent=39 // pred_check_branch
          %249 = sbr.rel (%p247) target = $region52
        $region51: #{tpu_custom_call.1} parent=39 // pred_region
          %250 = dma.done [#allocation6], 3072
        $region52: #{tpu_custom_call.1} parent=39 // pred_fallthru
          _
        %s251 = sand.u32 %s31, 1
        %s252 = scalar_lea.sflag [#allocation3], %s251
        %s253 = sand.u32 %s31, 1
        %s254 = smul.addr %s253, 32
        %s255 = scalar_lea.vmem [#allocation2], %s254
        %p256 = pneg %p44
        %p257 = pneg %p41
        %p258 = pneg %p65
        %p259 = pneg %p62
        %p260 = pneg %p86
        %p261 = pneg %p83
        %p262 = pneg %p107
        %p263 = pneg %p104
        %p264 = pneg %p128
        %p265 = pneg %p125
        %p266 = pneg %p154
        %p267 = pneg %p151
        %s268 = sand.u32 %s141, 1
        %s269 = scalar_lea.sflag [#allocation4], %s268
        %s270 = sand.u32 %s141, 1
        %s271 = smul.addr %s270, 64
        %s272 = scalar_lea.vmem [#allocation8], %s271
        %s273 = smul.u32 4, %s23
        %s274 = smul.u32 4, %s23
        %v276 = vlaneseq
        %v277 = vshrl.u32 %v276, 7
        %v278 = vadd.s32 %v277, 8
        %v279 = vadd.s32 %v277, 16
        %v280 = vadd.s32 %v277, 24
        %v281 = vadd.s32 %v277, 32
        %v282 = vadd.s32 %v277, 40
        %v283 = vadd.s32 %v277, 48
        %v284 = vadd.s32 %v277, 56
        %vm285 = vcmp.lt.s32.totalorder %v277, 0
        %v286 = vsub.s32 0, %v277
        %v287 = vsel %vm285, %v286, %v277
        %v288 = vshrl.u32 %v287, 4
        %v289 = vand.u32 %v287, 15
        %v290 = vsub.s32 0, %v289
        %v291 = vsel %vm285, %v290, %v289
        %vm292 = vcmp.lt.s32.totalorder %v278, 0
        %v293 = vsub.s32 0, %v278
        %v294 = vsel %vm292, %v293, %v278
        %v295 = vshrl.u32 %v294, 4
        %v296 = vand.u32 %v294, 15
        %v297 = vsub.s32 0, %v296
        %v298 = vsel %vm292, %v297, %v296
        %vm299 = vcmp.lt.s32.totalorder %v279, 0
        %v300 = vsub.s32 0, %v279
        %v301 = vsel %vm299, %v300, %v279
        %v302 = vshrl.u32 %v301, 4
        %v303 = vand.u32 %v301, 15
        %v304 = vsub.s32 0, %v303
        %v305 = vsel %vm299, %v304, %v303
        %vm306 = vcmp.lt.s32.totalorder %v280, 0
        %v307 = vsub.s32 0, %v280
        %v308 = vsel %vm306, %v307, %v280
        %v309 = vshrl.u32 %v308, 4
        %v310 = vand.u32 %v308, 15
        %v311 = vsub.s32 0, %v310
        %v312 = vsel %vm306, %v311, %v310
        %vm313 = vcmp.lt.s32.totalorder %v281, 0
        %v314 = vsub.s32 0, %v281
        %v315 = vsel %vm313, %v314, %v281
        %v316 = vshrl.u32 %v315, 4
        %v317 = vand.u32 %v315, 15
        %v318 = vsub.s32 0, %v317
        %v319 = vsel %vm313, %v318, %v317
        %vm320 = vcmp.lt.s32.totalorder %v282, 0
        %v321 = vsub.s32 0, %v282
        %v322 = vsel %vm320, %v321, %v282
        %v323 = vshrl.u32 %v322, 4
        %v324 = vand.u32 %v322, 15
        %v325 = vsub.s32 0, %v324
        %v326 = vsel %vm320, %v325, %v324
        %vm327 = vcmp.lt.s32.totalorder %v283, 0
        %v328 = vsub.s32 0, %v283
        %v329 = vsel %vm327, %v328, %v283
        %v330 = vshrl.u32 %v329, 4
        %v331 = vand.u32 %v329, 15
        %v332 = vsub.s32 0, %v331
        %v333 = vsel %vm327, %v332, %v331
        %vm334 = vcmp.lt.s32.totalorder %v284, 0
        %v335 = vsub.s32 0, %v284
        %v336 = vsel %vm334, %v335, %v284
        %v337 = vshrl.u32 %v336, 4
        %v338 = vand.u32 %v336, 15
        %v339 = vsub.s32 0, %v338
        %v340 = vsel %vm334, %v339, %v338
        %vm341 = vcmp.ne.s32.totalorder %v291, 0
        %vm342 = vcmp.ne.s32.totalorder %v298, 0
        %vm343 = vcmp.ne.s32.totalorder %v305, 0
        %vm344 = vcmp.ne.s32.totalorder %v312, 0
        %vm345 = vcmp.ne.s32.totalorder %v319, 0
        %vm346 = vcmp.ne.s32.totalorder %v326, 0
        %vm347 = vcmp.ne.s32.totalorder %v333, 0
        %vm348 = vcmp.ne.s32.totalorder %v340, 0
        %vm349 = vcmp.lt.s32.totalorder %v291, 0
        %vm350 = vcmp.lt.s32.totalorder %v298, 0
        %vm351 = vcmp.lt.s32.totalorder %v305, 0
        %vm352 = vcmp.lt.s32.totalorder %v312, 0
        %vm353 = vcmp.lt.s32.totalorder %v319, 0
        %vm354 = vcmp.lt.s32.totalorder %v326, 0
        %vm355 = vcmp.lt.s32.totalorder %v333, 0
        %vm356 = vcmp.lt.s32.totalorder %v340, 0
        %vm357 = vmand %vm349, %vm341
        %vm358 = vmand %vm350, %vm342
        %vm359 = vmand %vm351, %vm343
        %vm360 = vmand %vm352, %vm344
        %vm361 = vmand %vm353, %vm345
        %vm362 = vmand %vm354, %vm346
        %vm363 = vmand %vm355, %vm347
        %vm364 = vmand %vm356, %vm348
        %v365 = vadd.s32 %v291, 16
        %v366 = vadd.s32 %v298, 16
        %v367 = vadd.s32 %v305, 16
        %v368 = vadd.s32 %v312, 16
        %v369 = vadd.s32 %v319, 16
        %v370 = vadd.s32 %v326, 16
        %v371 = vadd.s32 %v333, 16
        %v372 = vadd.s32 %v340, 16
        %v373 = vsel %vm357, %v365, %v291
        %v374 = vsel %vm358, %v366, %v298
        %v375 = vsel %vm359, %v367, %v305
        %v376 = vsel %vm360, %v368, %v312
        %v377 = vsel %vm361, %v369, %v319
        %v378 = vsel %vm362, %v370, %v326
        %v379 = vsel %vm363, %v371, %v333
        %v380 = vsel %vm364, %v372, %v340
        %vm381 = vcmp.ne.s32.totalorder %v373, 0
        %vm382 = vcmp.ne.s32.totalorder %v374, 0
        %vm383 = vcmp.ne.s32.totalorder %v375, 0
        %vm384 = vcmp.ne.s32.totalorder %v376, 0
        %vm385 = vcmp.ne.s32.totalorder %v377, 0
        %vm386 = vcmp.ne.s32.totalorder %v378, 0
        %vm387 = vcmp.ne.s32.totalorder %v379, 0
        %vm388 = vcmp.ne.s32.totalorder %v380, 0
        %vm389 = vcmp.ne.s32.totalorder %v373, 15
        %vm390 = vcmp.ne.s32.totalorder %v374, 15
        %vm391 = vcmp.ne.s32.totalorder %v375, 15
        %vm392 = vcmp.ne.s32.totalorder %v376, 15
        %vm393 = vcmp.ne.s32.totalorder %v377, 15
        %vm394 = vcmp.ne.s32.totalorder %v378, 15
        %vm395 = vcmp.ne.s32.totalorder %v379, 15
        %vm396 = vcmp.ne.s32.totalorder %v380, 15
        %v397 = vld [vmem:[%s238] sm:$0xf]
        %v398 = vld [vmem:[%s238 + $0x4] sm:$0xf]
        %v399 = vld [vmem:[%s238 + $0x8] sm:$0xf]
        %v400 = vld [vmem:[%s238 + $0xc] sm:$0xf]
        %v401 = vld [vmem:[%s238 + $0x10] sm:$0xf]
        %v402 = vld [vmem:[%s238 + $0x14] sm:$0xf]
        %v403 = vld [vmem:[%s238 + $0x18] sm:$0xf]
        %v404 = vld [vmem:[%s238 + $0x1c] sm:$0xf]
        %v405 = vld [vmem:[#allocation5] sm:$0xff]
        %v406 = vld [vmem:[#allocation5 + $0x8] sm:$0xf]
        %v407 = vld [vmem:[#allocation5 + $0xc] sm:$0xff]
        %v408 = vld [vmem:[#allocation5 + $0x14] sm:$0xf]
        %v409 = vld [vmem:[#allocation5 + $0x18] sm:$0xff]
        %v410 = vld [vmem:[#allocation5 + $0x20] sm:$0xf]
        %v411 = vld [vmem:[#allocation5 + $0x24] sm:$0xff]
        %v412 = vld [vmem:[#allocation5 + $0x2c] sm:$0xf]
        %v413 = vld [vmem:[#allocation5 + $0x30] sm:$0xff]
        %v414 = vld [vmem:[#allocation5 + $0x38] sm:$0xf]
        %v415 = vld [vmem:[#allocation5 + $0x3c] sm:$0xff]
        %v416 = vld [vmem:[#allocation5 + $0x44] sm:$0xf]
        %v417 = vld [vmem:[#allocation5 + $0x48] sm:$0xff]
        %v418 = vld [vmem:[#allocation5 + $0x50] sm:$0xf]
        %v419 = vld [vmem:[#allocation5 + $0x54] sm:$0xff]
        %v420 = vld [vmem:[#allocation5 + $0x5c] sm:$0xf]
        %v421 = vld [vmem:[#allocation5 + $0x60] sm:$0xff]
        %v422 = vld [vmem:[#allocation5 + $0x68] sm:$0xf]
        %v423 = vld [vmem:[#allocation5 + $0x6c] sm:$0xff]
        %v424 = vld [vmem:[#allocation5 + $0x74] sm:$0xf]
        %v425 = vld [vmem:[#allocation5 + $0x78] sm:$0xff]
        %v426 = vld [vmem:[#allocation5 + $0x80] sm:$0xf]
        %v427 = vld [vmem:[#allocation5 + $0x84] sm:$0xff]
        %v428 = vld [vmem:[#allocation5 + $0x8c] sm:$0xf]
        %v429 = vld [vmem:[#allocation5 + $0x90] sm:$0xff]
        %v430 = vld [vmem:[#allocation5 + $0x98] sm:$0xf]
        %v431 = vld [vmem:[#allocation5 + $0x9c] sm:$0xff]
        %v432 = vld [vmem:[#allocation5 + $0xa4] sm:$0xf]
        %v433 = vld [vmem:[#allocation5 + $0xa8] sm:$0xff]
        %v434 = vld [vmem:[#allocation5 + $0xb0] sm:$0xf]
        %v435 = vld [vmem:[#allocation5 + $0xb4] sm:$0xff]
        %v436 = vld [vmem:[#allocation5 + $0xbc] sm:$0xf]
        %v445 = vunpack.c.l.b16 %v397
        %v446 = vunpack.c.l.b16 %v398
        %v447 = vunpack.c.l.b16 %v399
        %v448 = vunpack.c.l.b16 %v400
        %v449 = vunpack.c.l.b16 %v401
        %v450 = vunpack.c.l.b16 %v402
        %v451 = vunpack.c.l.b16 %v403
        %v452 = vunpack.c.l.b16 %v404
        %v453 = vpack.c.b16 %v446, %v445
        %v454 = vpack.c.b16 %v448, %v447
        %v455 = vpack.c.b16 %v450, %v449
        %v456 = vpack.c.b16 %v452, %v451
        %v493 = vunpack.c.l.b16 %v405
        %v494 = vunpack.c.h.b16 %v405
        %v495 = vunpack.c.l.b16 %v406
        %v496 = vunpack.c.l.b16 %v407
        %v497 = vunpack.c.h.b16 %v407
        %v498 = vunpack.c.l.b16 %v408
        %v499 = vunpack.c.l.b16 %v409
        %v500 = vunpack.c.h.b16 %v409
        %v501 = vunpack.c.l.b16 %v410
        %v502 = vunpack.c.l.b16 %v411
        %v503 = vunpack.c.h.b16 %v411
        %v504 = vunpack.c.l.b16 %v412
        %v505 = vunpack.c.l.b16 %v413
        %v506 = vunpack.c.h.b16 %v413
        %v507 = vunpack.c.l.b16 %v414
        %v508 = vunpack.c.l.b16 %v415
        %v509 = vunpack.c.h.b16 %v415
        %v510 = vunpack.c.l.b16 %v416
        %v511 = vunpack.c.l.b16 %v417
        %v512 = vunpack.c.h.b16 %v417
        %v513 = vunpack.c.l.b16 %v418
        %v514 = vunpack.c.l.b16 %v419
        %v515 = vunpack.c.h.b16 %v419
        %v516 = vunpack.c.l.b16 %v420
        %v517 = vunpack.c.l.b16 %v421
        %v518 = vunpack.c.h.b16 %v421
        %v519 = vunpack.c.l.b16 %v422
        %v520 = vunpack.c.l.b16 %v423
        %v521 = vunpack.c.h.b16 %v423
        %v522 = vunpack.c.l.b16 %v424
        %v523 = vunpack.c.l.b16 %v425
        %v524 = vunpack.c.h.b16 %v425
        %v525 = vunpack.c.l.b16 %v426
        %v526 = vunpack.c.l.b16 %v427
        %v527 = vunpack.c.h.b16 %v427
        %v528 = vunpack.c.l.b16 %v428
        %v529 = vunpack.c.l.b16 %v429
        %v530 = vunpack.c.h.b16 %v429
        %v531 = vunpack.c.l.b16 %v430
        %v532 = vunpack.c.l.b16 %v431
        %v533 = vunpack.c.h.b16 %v431
        %v534 = vunpack.c.l.b16 %v432
        %v535 = vunpack.c.l.b16 %v433
        %v536 = vunpack.c.h.b16 %v433
        %v537 = vunpack.c.l.b16 %v434
        %v538 = vunpack.c.l.b16 %v435
        %v539 = vunpack.c.h.b16 %v435
        %v540 = vunpack.c.l.b16 %v436
        %v541 = vpack.c.b16 %v496, %v493
        %v542 = vpack.c.b16 %v497, %v494
        %v543 = vpack.c.b16 %v498, %v495
        %v544 = vpack.c.b16 %v502, %v499
        %v545 = vpack.c.b16 %v503, %v500
        %v546 = vpack.c.b16 %v504, %v501
        %v547 = vpack.c.b16 %v508, %v505
        %v548 = vpack.c.b16 %v509, %v506
        %v549 = vpack.c.b16 %v510, %v507
        %v550 = vpack.c.b16 %v514, %v511
        %v551 = vpack.c.b16 %v515, %v512
        %v552 = vpack.c.b16 %v516, %v513
        %v553 = vpack.c.b16 %v520, %v517
        %v554 = vpack.c.b16 %v521, %v518
        %v555 = vpack.c.b16 %v522, %v519
        %v556 = vpack.c.b16 %v526, %v523
        %v557 = vpack.c.b16 %v527, %v524
        %v558 = vpack.c.b16 %v528, %v525
        %v559 = vpack.c.b16 %v532, %v529
        %v560 = vpack.c.b16 %v533, %v530
        %v561 = vpack.c.b16 %v534, %v531
        %v562 = vpack.c.b16 %v538, %v535
        %v563 = vpack.c.b16 %v539, %v536
        %v564 = vpack.c.b16 %v540, %v537
        %589 = vmatprep.subr.bf16.mxu0 %v542
        %590 = vmatpush1.bf16.msra.mxu0 %v541
        %591 = vmatprep.subr.bf16.mxu0 %v545
        %592 = vmatpush1.bf16.msra.mxu0 %v544
        %593 = vmatprep.subr.bf16.mxu0 %v548
        %594 = vmatpush1.bf16.msra.mxu0 %v547
        %595 = vmatprep.subr.bf16.mxu0 %v551
        %596 = vmatpush1.bf16.msra.mxu0 %v550
        %597 = vmatprep.subr.bf16.mxu0 %v554
        %598 = vmatpush1.bf16.msra.mxu0 %v553
        %599 = vmatprep.subr.bf16.mxu0 %v557
        %600 = vmatpush1.bf16.msra.mxu0 %v556
        %601 = vmatprep.subr.bf16.mxu0 %v560
        %602 = vmatpush1.bf16.msra.mxu0 %v559
        %603 = vmatprep.subr.bf16.mxu0 %v563
        %604 = vmatpush1.bf16.msra.mxu0 %v562
        %605 = vmatprep.subr.bf16.mxu0 0
        %606 = vmatpush1.bf16.msra.mxu0 0
        %607 = vmatprep.subr.bf16.mxu0 0
        %608 = vmatpush1.bf16.msra.mxu0 0
        %609 = vmatprep.subr.bf16.mxu0 0
        %610 = vmatpush1.bf16.msra.mxu0 0
        %611 = vmatprep.subr.bf16.mxu0 0
        %612 = vmatpush1.bf16.msra.mxu0 0
        %613 = vmatprep.subr.bf16.mxu0 0
        %614 = vmatpush1.bf16.msra.mxu0 0
        %615 = vmatprep.subr.bf16.mxu0 0
        %616 = vmatpush1.bf16.msra.mxu0 0
        %617 = vmatprep.subr.bf16.mxu0 0
        %618 = vmatpush1.bf16.msra.mxu0 0
        %619 = vmatprep.subr.bf16.mxu0 0
        %620 = vmatpush1.bf16.msra.mxu0 0
        %621 = vmatprep.mubr.bf16.mxu0 0
        %622 = vmatmul.mubr.bf16.gmra.mrb[0].mxu0 %v453
        %v623 = vpop.f32.mrb[0].mxu0
        %v624 = vadd.f32 0.0, %v623
        %v625 = vpop.f32.mrb[0].mxu0
        %v626 = vadd.f32 0.0, %v625
        %v627 = vpop.f32.mrb[0].mxu0
        %v628 = vadd.f32 0.0, %v627
        %v629 = vpop.f32.mrb[0].mxu0
        %v630 = vadd.f32 0.0, %v629
        %631 = vmatprep.mubr.bf16.mxu0 0
        %632 = vmatmul.mubr.bf16.gmra.mrb[0].mxu0 %v454
        %v633 = vpop.f32.mrb[0].mxu0
        %v634 = vadd.f32 0.0, %v633
        %v635 = vpop.f32.mrb[0].mxu0
        %v636 = vadd.f32 0.0, %v635
        %v637 = vpop.f32.mrb[0].mxu0
        %v638 = vadd.f32 0.0, %v637
        %v639 = vpop.f32.mrb[0].mxu0
        %v640 = vadd.f32 0.0, %v639
        %641 = vmatprep.mubr.bf16.mxu0 0
        %642 = vmatmul.mubr.bf16.gmra.mrb[0].mxu0 %v455
        %v643 = vpop.f32.mrb[0].mxu0
        %v644 = vadd.f32 0.0, %v643
        %v645 = vpop.f32.mrb[0].mxu0
        %v646 = vadd.f32 0.0, %v645
        %v647 = vpop.f32.mrb[0].mxu0
        %v648 = vadd.f32 0.0, %v647
        %v649 = vpop.f32.mrb[0].mxu0
        %v650 = vadd.f32 0.0, %v649
        %651 = vmatprep.mubr.bf16.mxu0 0
        %652 = vmatmul.mubr.bf16.gmra.mrb[0].mxu0 %v456
        %v653 = vpop.f32.mrb[0].mxu0
        %v654 = vadd.f32 0.0, %v653
        %v655 = vpop.f32.mrb[0].mxu0
        %v656 = vadd.f32 0.0, %v655
        %v657 = vpop.f32.mrb[0].mxu0
        %v658 = vadd.f32 0.0, %v657
        %v659 = vpop.f32.mrb[0].mxu0
        %v660 = vadd.f32 0.0, %v659
        %661 = vdwg.mxu0
        %662 = vmatprep.subr.bf16.mxu0 0
        %663 = vmatpush1.bf16.msra.mxu0 %v543
        %664 = vmatprep.subr.bf16.mxu0 0
        %665 = vmatpush1.bf16.msra.mxu0 %v546
        %666 = vmatprep.subr.bf16.mxu0 0
        %667 = vmatpush1.bf16.msra.mxu0 %v549
        %668 = vmatprep.subr.bf16.mxu0 0
        %669 = vmatpush1.bf16.msra.mxu0 %v552
        %670 = vmatprep.subr.bf16.mxu0 0
        %671 = vmatpush1.bf16.msra.mxu0 %v555
        %672 = vmatprep.subr.bf16.mxu0 0
        %673 = vmatpush1.bf16.msra.mxu0 %v558
        %674 = vmatprep.subr.bf16.mxu0 0
        %675 = vmatpush1.bf16.msra.mxu0 %v561
        %676 = vmatprep.subr.bf16.mxu0 0
        %677 = vmatpush1.bf16.msra.mxu0 %v564
        %678 = vmatprep.subr.bf16.mxu0 0
        %679 = vmatpush1.bf16.msra.mxu0 0
        %680 = vmatprep.subr.bf16.mxu0 0
        %681 = vmatpush1.bf16.msra.mxu0 0
        %682 = vmatprep.subr.bf16.mxu0 0
        %683 = vmatpush1.bf16.msra.mxu0 0
        %684 = vmatprep.subr.bf16.mxu0 0
        %685 = vmatpush1.bf16.msra.mxu0 0
        %686 = vmatprep.subr.bf16.mxu0 0
        %687 = vmatpush1.bf16.msra.mxu0 0
        %688 = vmatprep.subr.bf16.mxu0 0
        %689 = vmatpush1.bf16.msra.mxu0 0
        %690 = vmatprep.subr.bf16.mxu0 0
        %691 = vmatpush1.bf16.msra.mxu0 0
        %692 = vmatprep.subr.bf16.mxu0 0
        %693 = vmatpush1.bf16.msra.mxu0 0
        %694 = vmatprep.mubr.bf16.mxu0 0
        %695 = vmatmul.mubr.bf16.gmra.mrb[0].mxu0 %v453
        %v696 = vpop.f32.mrb[0].mxu0
        %v697 = vadd.f32 0.0, %v696
        %v698 = vpop.f32.mrb[0].mxu0
        %v699 = vpop.f32.mrb[0].mxu0
        %v700 = vadd.f32 0.0, %v699
        %v701 = vpop.f32.mrb[0].mxu0
        %702 = vmatprep.mubr.bf16.mxu0 0
        %703 = vmatmul.mubr.bf16.gmra.mrb[0].mxu0 %v454
        %v704 = vpop.f32.mrb[0].mxu0
        %v705 = vadd.f32 0.0, %v704
        %v706 = vpop.f32.mrb[0].mxu0
        %v707 = vpop.f32.mrb[0].mxu0
        %v708 = vadd.f32 0.0, %v707
        %v709 = vpop.f32.mrb[0].mxu0
        %710 = vmatprep.mubr.bf16.mxu0 0
        %711 = vmatmul.mubr.bf16.gmra.mrb[0].mxu0 %v455
        %v712 = vpop.f32.mrb[0].mxu0
        %v713 = vadd.f32 0.0, %v712
        %v714 = vpop.f32.mrb[0].mxu0
        %v715 = vpop.f32.mrb[0].mxu0
        %v716 = vadd.f32 0.0, %v715
        %v717 = vpop.f32.mrb[0].mxu0
        %718 = vmatprep.mubr.bf16.mxu0 0
        %719 = vmatmul.mubr.bf16.gmra.mrb[0].mxu0 %v456
        %v720 = vpop.f32.mrb[0].mxu0
        %v721 = vadd.f32 0.0, %v720
        %v722 = vpop.f32.mrb[0].mxu0
        %v723 = vpop.f32.mrb[0].mxu0
        %v724 = vadd.f32 0.0, %v723
        %v725 = vpop.f32.mrb[0].mxu0
        %726 = vdwg.mxu0
        %v727 = vrot.slane %v624, 7
        %v728 = vrot.slane %v628, 7
        %v729 = vrot.slane %v634, 7
        %v730 = vrot.slane %v638, 7
        %v731 = vrot.slane %v644, 7
        %v732 = vrot.slane %v648, 7
        %v733 = vrot.slane %v654, 7
        %v734 = vrot.slane %v658, 7
        %vm735 = vcmp.lt.s32.totalorder %v277, 1
        %v736 = vsel %vm735, %v733, %v734
        %v737 = vsel %vm735, %v732, %v733
        %v738 = vsel %vm735, %v731, %v732
        %v739 = vsel %vm735, %v730, %v731
        %v740 = vsel %vm735, %v729, %v730
        %v741 = vsel %vm735, %v728, %v729
        %v742 = vsel %vm735, %v727, %v728
        %v743 = vsel %vm735, %v734, %v727
        %v744 = vsel %vm381, 1, 0
        %v745 = vsel %vm382, 1, 0
        %v746 = vsel %vm383, 1, 0
        %v747 = vsel %vm384, 1, 0
        %v748 = vsel %vm385, 1, 0
        %v749 = vsel %vm386, 1, 0
        %v750 = vsel %vm387, 1, 0
        %v751 = vsel %vm388, 1, 0
        %vm752 = vcmp.eq.s32.totalorder %v744, 1
        %vm753 = vcmp.eq.s32.totalorder %v745, 1
        %vm754 = vcmp.eq.s32.totalorder %v746, 1
        %vm755 = vcmp.eq.s32.totalorder %v747, 1
        %vm756 = vcmp.eq.s32.totalorder %v748, 1
        %vm757 = vcmp.eq.s32.totalorder %v749, 1
        %vm758 = vcmp.eq.s32.totalorder %v750, 1
        %vm759 = vcmp.eq.s32.totalorder %v751, 1
        %v760 = vsel %vm752, %v743, 0.0
        %v761 = vsel %vm753, %v742, 0.0
        %v762 = vsel %vm754, %v741, 0.0
        %v763 = vsel %vm755, %v740, 0.0
        %v764 = vsel %vm756, %v739, 0.0
        %v765 = vsel %vm757, %v738, 0.0
        %v766 = vsel %vm758, %v737, 0.0
        %v767 = vsel %vm759, %v736, 0.0
        %v768 = vrot.slane %v697, 1
        %v769 = vrot.slane %v700, 1
        %v770 = vrot.slane %v705, 1
        %v771 = vrot.slane %v708, 1
        %v772 = vrot.slane %v713, 1
        %v773 = vrot.slane %v716, 1
        %v774 = vrot.slane %v721, 1
        %v775 = vrot.slane %v724, 1
        %vm776 = vcmp.lt.s32.totalorder %v277, 7
        %v777 = vsel %vm776, %v774, %v775
        %v778 = vsel %vm776, %v773, %v774
        %v779 = vsel %vm776, %v772, %v773
        %v780 = vsel %vm776, %v771, %v772
        %v781 = vsel %vm776, %v770, %v771
        %v782 = vsel %vm776, %v769, %v770
        %v783 = vsel %vm776, %v768, %v769
        %v784 = vsel %vm776, %v775, %v768
        %v785 = vsel %vm389, 1, 0
        %v786 = vsel %vm390, 1, 0
        %v787 = vsel %vm391, 1, 0
        %v788 = vsel %vm392, 1, 0
        %v789 = vsel %vm393, 1, 0
        %v790 = vsel %vm394, 1, 0
        %v791 = vsel %vm395, 1, 0
        %v792 = vsel %vm396, 1, 0
        %vm793 = vcmp.eq.s32.totalorder %v785, 1
        %vm794 = vcmp.eq.s32.totalorder %v786, 1
        %vm795 = vcmp.eq.s32.totalorder %v787, 1
        %vm796 = vcmp.eq.s32.totalorder %v788, 1
        %vm797 = vcmp.eq.s32.totalorder %v789, 1
        %vm798 = vcmp.eq.s32.totalorder %v790, 1
        %vm799 = vcmp.eq.s32.totalorder %v791, 1
        %vm800 = vcmp.eq.s32.totalorder %v792, 1
        %v801 = vsel %vm793, %v783, 0.0
        %v802 = vsel %vm794, %v782, 0.0
        %v803 = vsel %vm795, %v781, 0.0
        %v804 = vsel %vm796, %v780, 0.0
        %v805 = vsel %vm797, %v779, 0.0
        %v806 = vsel %vm798, %v778, 0.0
        %v807 = vsel %vm799, %v777, 0.0
        %v808 = vsel %vm800, %v784, 0.0
        %v809 = vadd.f32 %v760, %v626
        %v810 = vadd.f32 %v761, %v630
        %v811 = vadd.f32 %v762, %v636
        %v812 = vadd.f32 %v763, %v640
        %v813 = vadd.f32 %v764, %v646
        %v814 = vadd.f32 %v765, %v650
        %v815 = vadd.f32 %v766, %v656
        %v816 = vadd.f32 %v767, %v660
        %v817 = vadd.f32 %v809, %v801
        %v818 = vadd.f32 %v810, %v802
        %v819 = vadd.f32 %v811, %v803
        %v820 = vadd.f32 %v812, %v804
        %v821 = vadd.f32 %v813, %v805
        %v822 = vadd.f32 %v814, %v806
        %v823 = vadd.f32 %v815, %v807
        %v824 = vadd.f32 %v816, %v808
        %v825 = vld [vmem:[%s2] sm:$0x1]
        %v827 = vlaneseq
        %v828 = vshrl.u32 %v827, 7
        %v829 = vsub.s32 0, %v828
        %v830 = vrot.slane %v825, %v829
        %v832 = vadd.f32 %v817, %v830
        %v833 = vadd.f32 %v818, %v830
        %v834 = vadd.f32 %v819, %v830
        %v835 = vadd.f32 %v820, %v830
        %v836 = vadd.f32 %v821, %v830
        %v837 = vadd.f32 %v822, %v830
        %v838 = vadd.f32 %v823, %v830
        %v839 = vadd.f32 %v824, %v830
        %v840 = vmax.f32 %v832, 0.0
        %v841 = vmax.f32 %v833, 0.0
        %v842 = vmax.f32 %v834, 0.0
        %v843 = vmax.f32 %v835, 0.0
        %v844 = vmax.f32 %v836, 0.0
        %v845 = vmax.f32 %v837, 0.0
        %v846 = vmax.f32 %v838, 0.0
        %v847 = vmax.f32 %v839, 0.0
        %v848 = vpack.c.bf16 %v841, %v840
        %v849 = vpack.c.bf16 %v843, %v842
        %v850 = vpack.c.bf16 %v845, %v844
        %v851 = vpack.c.bf16 %v847, %v846
        %v852 = vld [vmem:[#allocation7] sm:$0xff]
        %v853 = vld [vmem:[#allocation7 + $0x8] sm:$0xf]
        %v854 = vld [vmem:[#allocation7 + $0xc] sm:$0xff]
        %v855 = vld [vmem:[#allocation7 + $0x14] sm:$0xf]
        %v856 = vld [vmem:[#allocation7 + $0x18] sm:$0xff]
        %v857 = vld [vmem:[#allocation7 + $0x20] sm:$0xf]
        %v858 = vld [vmem:[#allocation7 + $0x24] sm:$0xff]
        %v859 = vld [vmem:[#allocation7 + $0x2c] sm:$0xf]
        %v860 = vld [vmem:[#allocation7 + $0x30] sm:$0xff]
        %v861 = vld [vmem:[#allocation7 + $0x38] sm:$0xf]
        %v862 = vld [vmem:[#allocation7 + $0x3c] sm:$0xff]
        %v863 = vld [vmem:[#allocation7 + $0x44] sm:$0xf]
        %v864 = vld [vmem:[#allocation7 + $0x48] sm:$0xff]
        %v865 = vld [vmem:[#allocation7 + $0x50] sm:$0xf]
        %v866 = vld [vmem:[#allocation7 + $0x54] sm:$0xff]
        %v867 = vld [vmem:[#allocation7 + $0x5c] sm:$0xf]
        %v868 = vld [vmem:[#allocation7 + $0x60] sm:$0xff]
        %v869 = vld [vmem:[#allocation7 + $0x68] sm:$0xf]
        %v870 = vld [vmem:[#allocation7 + $0x6c] sm:$0xff]
        %v871 = vld [vmem:[#allocation7 + $0x74] sm:$0xf]
        %v872 = vld [vmem:[#allocation7 + $0x78] sm:$0xff]
        %v873 = vld [vmem:[#allocation7 + $0x80] sm:$0xf]
        %v874 = vld [vmem:[#allocation7 + $0x84] sm:$0xff]
        %v875 = vld [vmem:[#allocation7 + $0x8c] sm:$0xf]
        %v876 = vld [vmem:[#allocation7 + $0x90] sm:$0xff]
        %v877 = vld [vmem:[#allocation7 + $0x98] sm:$0xf]
        %v878 = vld [vmem:[#allocation7 + $0x9c] sm:$0xff]
        %v879 = vld [vmem:[#allocation7 + $0xa4] sm:$0xf]
        %v880 = vld [vmem:[#allocation7 + $0xa8] sm:$0xff]
        %v881 = vld [vmem:[#allocation7 + $0xb0] sm:$0xf]
        %v882 = vld [vmem:[#allocation7 + $0xb4] sm:$0xff]
        %v883 = vld [vmem:[#allocation7 + $0xbc] sm:$0xf]
        %v916 = vunpack.c.l.b16 %v852
        %v917 = vunpack.c.h.b16 %v852
        %v918 = vunpack.c.l.b16 %v853
        %v919 = vunpack.c.l.b16 %v854
        %v920 = vunpack.c.h.b16 %v854
        %v921 = vunpack.c.l.b16 %v855
        %v922 = vunpack.c.l.b16 %v856
        %v923 = vunpack.c.h.b16 %v856
        %v924 = vunpack.c.l.b16 %v857
        %v925 = vunpack.c.l.b16 %v858
        %v926 = vunpack.c.h.b16 %v858
        %v927 = vunpack.c.l.b16 %v859
        %v928 = vunpack.c.l.b16 %v860
        %v929 = vunpack.c.h.b16 %v860
        %v930 = vunpack.c.l.b16 %v861
        %v931 = vunpack.c.l.b16 %v862
        %v932 = vunpack.c.h.b16 %v862
        %v933 = vunpack.c.l.b16 %v863
        %v934 = vunpack.c.l.b16 %v864
        %v935 = vunpack.c.h.b16 %v864
        %v936 = vunpack.c.l.b16 %v865
        %v937 = vunpack.c.l.b16 %v866
        %v938 = vunpack.c.h.b16 %v866
        %v939 = vunpack.c.l.b16 %v867
        %v940 = vunpack.c.l.b16 %v868
        %v941 = vunpack.c.h.b16 %v868
        %v942 = vunpack.c.l.b16 %v869
        %v943 = vunpack.c.l.b16 %v870
        %v944 = vunpack.c.h.b16 %v870
        %v945 = vunpack.c.l.b16 %v871
        %v946 = vunpack.c.l.b16 %v872
        %v947 = vunpack.c.h.b16 %v872
        %v948 = vunpack.c.l.b16 %v873
        %v949 = vunpack.c.l.b16 %v874
        %v950 = vunpack.c.h.b16 %v874
        %v951 = vunpack.c.l.b16 %v875
        %v952 = vunpack.c.l.b16 %v876
        %v953 = vunpack.c.h.b16 %v876
        %v954 = vunpack.c.l.b16 %v877
        %v955 = vunpack.c.l.b16 %v878
        %v956 = vunpack.c.h.b16 %v878
        %v957 = vunpack.c.l.b16 %v879
        %v958 = vunpack.c.l.b16 %v880
        %v959 = vunpack.c.h.b16 %v880
        %v960 = vunpack.c.l.b16 %v881
        %v961 = vunpack.c.l.b16 %v882
        %v962 = vunpack.c.h.b16 %v882
        %v963 = vunpack.c.l.b16 %v883
        %v964 = vpack.c.b16 %v919, %v916
        %v965 = vpack.c.b16 %v920, %v917
        %v966 = vpack.c.b16 %v921, %v918
        %v967 = vpack.c.b16 %v925, %v922
        %v968 = vpack.c.b16 %v926, %v923
        %v969 = vpack.c.b16 %v927, %v924
        %v970 = vpack.c.b16 %v931, %v928
        %v971 = vpack.c.b16 %v932, %v929
        %v972 = vpack.c.b16 %v933, %v930
        %v973 = vpack.c.b16 %v937, %v934
        %v974 = vpack.c.b16 %v938, %v935
        %v975 = vpack.c.b16 %v939, %v936
        %v976 = vpack.c.b16 %v943, %v940
        %v977 = vpack.c.b16 %v944, %v941
        %v978 = vpack.c.b16 %v945, %v942
        %v979 = vpack.c.b16 %v949, %v946
        %v980 = vpack.c.b16 %v950, %v947
        %v981 = vpack.c.b16 %v951, %v948
        %v982 = vpack.c.b16 %v955, %v952
        %v983 = vpack.c.b16 %v956, %v953
        %v984 = vpack.c.b16 %v957, %v954
        %v985 = vpack.c.b16 %v961, %v958
        %v986 = vpack.c.b16 %v962, %v959
        %v987 = vpack.c.b16 %v963, %v960
        %1012 = vmatprep.subr.bf16.mxu0 %v965
        %1013 = vmatpush1.bf16.msra.mxu0 %v964
        %1014 = vmatprep.subr.bf16.mxu0 %v968
        %1015 = vmatpush1.bf16.msra.mxu0 %v967
        %1016 = vmatprep.subr.bf16.mxu0 %v971
        %1017 = vmatpush1.bf16.msra.mxu0 %v970
        %1018 = vmatprep.subr.bf16.mxu0 %v974
        %1019 = vmatpush1.bf16.msra.mxu0 %v973
        %1020 = vmatprep.subr.bf16.mxu0 %v977
        %1021 = vmatpush1.bf16.msra.mxu0 %v976
        %1022 = vmatprep.subr.bf16.mxu0 %v980
        %1023 = vmatpush1.bf16.msra.mxu0 %v979
        %1024 = vmatprep.subr.bf16.mxu0 %v983
        %1025 = vmatpush1.bf16.msra.mxu0 %v982
        %1026 = vmatprep.subr.bf16.mxu0 %v986
        %1027 = vmatpush1.bf16.msra.mxu0 %v985
        %1028 = vmatprep.subr.bf16.mxu0 0
        %1029 = vmatpush1.bf16.msra.mxu0 0
        %1030 = vmatprep.subr.bf16.mxu0 0
        %1031 = vmatpush1.bf16.msra.mxu0 0
        %1032 = vmatprep.subr.bf16.mxu0 0
        %1033 = vmatpush1.bf16.msra.mxu0 0
        %1034 = vmatprep.subr.bf16.mxu0 0
        %1035 = vmatpush1.bf16.msra.mxu0 0
        %1036 = vmatprep.subr.bf16.mxu0 0
        %1037 = vmatpush1.bf16.msra.mxu0 0
        %1038 = vmatprep.subr.bf16.mxu0 0
        %1039 = vmatpush1.bf16.msra.mxu0 0
        %1040 = vmatprep.subr.bf16.mxu0 0
        %1041 = vmatpush1.bf16.msra.mxu0 0
        %1042 = vmatprep.subr.bf16.mxu0 0
        %1043 = vmatpush1.bf16.msra.mxu0 0
        %1044 = vmatprep.mubr.bf16.mxu0 0
        %1045 = vmatmul.mubr.bf16.gmra.mrb[0].mxu0 %v848
        %v1046 = vpop.f32.mrb[0].mxu0
        %v1047 = vadd.f32 0.0, %v1046
        %v1048 = vpop.f32.mrb[0].mxu0
        %v1049 = vadd.f32 0.0, %v1048
        %v1050 = vpop.f32.mrb[0].mxu0
        %v1051 = vadd.f32 0.0, %v1050
        %v1052 = vpop.f32.mrb[0].mxu0
        %v1053 = vadd.f32 0.0, %v1052
        %1054 = vmatprep.mubr.bf16.mxu0 0
        %1055 = vmatmul.mubr.bf16.gmra.mrb[0].mxu0 %v849
        %v1056 = vpop.f32.mrb[0].mxu0
        %v1057 = vadd.f32 0.0, %v1056
        %v1058 = vpop.f32.mrb[0].mxu0
        %v1059 = vadd.f32 0.0, %v1058
        %v1060 = vpop.f32.mrb[0].mxu0
        %v1061 = vadd.f32 0.0, %v1060
        %v1062 = vpop.f32.mrb[0].mxu0
        %v1063 = vadd.f32 0.0, %v1062
        %1064 = vmatprep.mubr.bf16.mxu0 0
        %1065 = vmatmul.mubr.bf16.gmra.mrb[0].mxu0 %v850
        %v1066 = vpop.f32.mrb[0].mxu0
        %v1067 = vadd.f32 0.0, %v1066
        %v1068 = vpop.f32.mrb[0].mxu0
        %v1069 = vadd.f32 0.0, %v1068
        %v1070 = vpop.f32.mrb[0].mxu0
        %v1071 = vadd.f32 0.0, %v1070
        %v1072 = vpop.f32.mrb[0].mxu0
        %v1073 = vadd.f32 0.0, %v1072
        %1074 = vmatprep.mubr.bf16.mxu0 0
        %1075 = vmatmul.mubr.bf16.gmra.mrb[0].mxu0 %v851
        %v1076 = vpop.f32.mrb[0].mxu0
        %v1077 = vadd.f32 0.0, %v1076
        %v1078 = vpop.f32.mrb[0].mxu0
        %v1079 = vadd.f32 0.0, %v1078
        %v1080 = vpop.f32.mrb[0].mxu0
        %v1081 = vadd.f32 0.0, %v1080
        %v1082 = vpop.f32.mrb[0].mxu0
        %v1083 = vadd.f32 0.0, %v1082
        %1084 = vdwg.mxu0
        %1085 = vmatprep.subr.bf16.mxu0 0
        %1086 = vmatpush1.bf16.msra.mxu0 %v966
        %1087 = vmatprep.subr.bf16.mxu0 0
        %1088 = vmatpush1.bf16.msra.mxu0 %v969
        %1089 = vmatprep.subr.bf16.mxu0 0
        %1090 = vmatpush1.bf16.msra.mxu0 %v972
        %1091 = vmatprep.subr.bf16.mxu0 0
        %1092 = vmatpush1.bf16.msra.mxu0 %v975
        %1093 = vmatprep.subr.bf16.mxu0 0
        %1094 = vmatpush1.bf16.msra.mxu0 %v978
        %1095 = vmatprep.subr.bf16.mxu0 0
        %1096 = vmatpush1.bf16.msra.mxu0 %v981
        %1097 = vmatprep.subr.bf16.mxu0 0
        %1098 = vmatpush1.bf16.msra.mxu0 %v984
        %1099 = vmatprep.subr.bf16.mxu0 0
        %1100 = vmatpush1.bf16.msra.mxu0 %v987
        %1101 = vmatprep.subr.bf16.mxu0 0
        %1102 = vmatpush1.bf16.msra.mxu0 0
        %1103 = vmatprep.subr.bf16.mxu0 0
        %1104 = vmatpush1.bf16.msra.mxu0 0
        %1105 = vmatprep.subr.bf16.mxu0 0
        %1106 = vmatpush1.bf16.msra.mxu0 0
        %1107 = vmatprep.subr.bf16.mxu0 0
        %1108 = vmatpush1.bf16.msra.mxu0 0
        %1109 = vmatprep.subr.bf16.mxu0 0
        %1110 = vmatpush1.bf16.msra.mxu0 0
        %1111 = vmatprep.subr.bf16.mxu0 0
        %1112 = vmatpush1.bf16.msra.mxu0 0
        %1113 = vmatprep.subr.bf16.mxu0 0
        %1114 = vmatpush1.bf16.msra.mxu0 0
        %1115 = vmatprep.subr.bf16.mxu0 0
        %1116 = vmatpush1.bf16.msra.mxu0 0
        %1117 = vmatprep.mubr.bf16.mxu0 0
        %1118 = vmatmul.mubr.bf16.gmra.mrb[0].mxu0 %v848
        %v1119 = vpop.f32.mrb[0].mxu0
        %v1120 = vadd.f32 0.0, %v1119
        %v1121 = vpop.f32.mrb[0].mxu0
        %v1122 = vpop.f32.mrb[0].mxu0
        %v1123 = vadd.f32 0.0, %v1122
        %v1124 = vpop.f32.mrb[0].mxu0
        %1125 = vmatprep.mubr.bf16.mxu0 0
        %1126 = vmatmul.mubr.bf16.gmra.mrb[0].mxu0 %v849
        %v1127 = vpop.f32.mrb[0].mxu0
        %v1128 = vadd.f32 0.0, %v1127
        %v1129 = vpop.f32.mrb[0].mxu0
        %v1130 = vpop.f32.mrb[0].mxu0
        %v1131 = vadd.f32 0.0, %v1130
        %v1132 = vpop.f32.mrb[0].mxu0
        %1133 = vmatprep.mubr.bf16.mxu0 0
        %1134 = vmatmul.mubr.bf16.gmra.mrb[0].mxu0 %v850
        %v1135 = vpop.f32.mrb[0].mxu0
        %v1136 = vadd.f32 0.0, %v1135
        %v1137 = vpop.f32.mrb[0].mxu0
        %v1138 = vpop.f32.mrb[0].mxu0
        %v1139 = vadd.f32 0.0, %v1138
        %v1140 = vpop.f32.mrb[0].mxu0
        %1141 = vmatprep.mubr.bf16.mxu0 0
        %1142 = vmatmul.mubr.bf16.gmra.mrb[0].mxu0 %v851
        %v1143 = vpop.f32.mrb[0].mxu0
        %v1144 = vadd.f32 0.0, %v1143
        %v1145 = vpop.f32.mrb[0].mxu0
        %v1146 = vpop.f32.mrb[0].mxu0
        %v1147 = vadd.f32 0.0, %v1146
        %v1148 = vpop.f32.mrb[0].mxu0
        %1149 = vdwg.mxu0
        %v1150 = vrot.slane %v1047, 7
        %v1151 = vrot.slane %v1051, 7
        %v1152 = vrot.slane %v1057, 7
        %v1153 = vrot.slane %v1061, 7
        %v1154 = vrot.slane %v1067, 7
        %v1155 = vrot.slane %v1071, 7
        %v1156 = vrot.slane %v1077, 7
        %v1157 = vrot.slane %v1081, 7
        %v1158 = vsel %vm735, %v1156, %v1157
        %v1159 = vsel %vm735, %v1155, %v1156
        %v1160 = vsel %vm735, %v1154, %v1155
        %v1161 = vsel %vm735, %v1153, %v1154
        %v1162 = vsel %vm735, %v1152, %v1153
        %v1163 = vsel %vm735, %v1151, %v1152
        %v1164 = vsel %vm735, %v1150, %v1151
        %v1165 = vsel %vm735, %v1157, %v1150
        %v1166 = vsel %vm752, %v1165, 0.0
        %v1167 = vsel %vm753, %v1164, 0.0
        %v1168 = vsel %vm754, %v1163, 0.0
        %v1169 = vsel %vm755, %v1162, 0.0
        %v1170 = vsel %vm756, %v1161, 0.0
        %v1171 = vsel %vm757, %v1160, 0.0
        %v1172 = vsel %vm758, %v1159, 0.0
        %v1173 = vsel %vm759, %v1158, 0.0
        %v1174 = vrot.slane %v1120, 1
        %v1175 = vrot.slane %v1123, 1
        %v1176 = vrot.slane %v1128, 1
        %v1177 = vrot.slane %v1131, 1
        %v1178 = vrot.slane %v1136, 1
        %v1179 = vrot.slane %v1139, 1
        %v1180 = vrot.slane %v1144, 1
        %v1181 = vrot.slane %v1147, 1
        %v1182 = vsel %vm776, %v1180, %v1181
        %v1183 = vsel %vm776, %v1179, %v1180
        %v1184 = vsel %vm776, %v1178, %v1179
        %v1185 = vsel %vm776, %v1177, %v1178
        %v1186 = vsel %vm776, %v1176, %v1177
        %v1187 = vsel %vm776, %v1175, %v1176
        %v1188 = vsel %vm776, %v1174, %v1175
        %v1189 = vsel %vm776, %v1181, %v1174
        %v1190 = vsel %vm793, %v1188, 0.0
        %v1191 = vsel %vm794, %v1187, 0.0
        %v1192 = vsel %vm795, %v1186, 0.0
        %v1193 = vsel %vm796, %v1185, 0.0
        %v1194 = vsel %vm797, %v1184, 0.0
        %v1195 = vsel %vm798, %v1183, 0.0
        %v1196 = vsel %vm799, %v1182, 0.0
        %v1197 = vsel %vm800, %v1189, 0.0
        %v1198 = vadd.f32 %v1166, %v1049
        %v1199 = vadd.f32 %v1167, %v1053
        %v1200 = vadd.f32 %v1168, %v1059
        %v1201 = vadd.f32 %v1169, %v1063
        %v1202 = vadd.f32 %v1170, %v1069
        %v1203 = vadd.f32 %v1171, %v1073
        %v1204 = vadd.f32 %v1172, %v1079
        %v1205 = vadd.f32 %v1173, %v1083
        %v1206 = vadd.f32 %v1198, %v1190
        %v1207 = vadd.f32 %v1199, %v1191
        %v1208 = vadd.f32 %v1200, %v1192
        %v1209 = vadd.f32 %v1201, %v1193
        %v1210 = vadd.f32 %v1202, %v1194
        %v1211 = vadd.f32 %v1203, %v1195
        %v1212 = vadd.f32 %v1204, %v1196
        %v1213 = vadd.f32 %v1205, %v1197
        %v1214 = vld [vmem:[%s4] sm:$0x1]
        %v1216 = vlaneseq
        %v1217 = vshrl.u32 %v1216, 7
        %v1218 = vsub.s32 0, %v1217
        %v1219 = vrot.slane %v1214, %v1218
        %v1221 = vadd.f32 %v1206, %v1219
        %v1222 = vadd.f32 %v1207, %v1219
        %v1223 = vadd.f32 %v1208, %v1219
        %v1224 = vadd.f32 %v1209, %v1219
        %v1225 = vadd.f32 %v1210, %v1219
        %v1226 = vadd.f32 %v1211, %v1219
        %v1227 = vadd.f32 %v1212, %v1219
        %v1228 = vadd.f32 %v1213, %v1219
        %1229 = vst [vmem:[%s272] sm:$0xff] %v1221
        %1230 = vst [vmem:[%s272 + $0x8] sm:$0xff] %v1222
        %1231 = vst [vmem:[%s272 + $0x10] sm:$0xff] %v1223
        %1232 = vst [vmem:[%s272 + $0x18] sm:$0xff] %v1224
        %1233 = vst [vmem:[%s272 + $0x20] sm:$0xff] %v1225
        %1234 = vst [vmem:[%s272 + $0x28] sm:$0xff] %v1226
        %1235 = vst [vmem:[%s272 + $0x30] sm:$0xff] %v1227
        %1236 = vst [vmem:[%s272 + $0x38] sm:$0xff] %v1228
        %s1237 = sand.u32 %s141, 1
        %s1238 = scalar_lea.sflag [#allocation4], %s1237
        %s1239 = sand.u32 %s141, 1
        %s1240 = smul.addr %s1239, 64
        %s1241 = scalar_lea.vmem [#allocation8], %s1240
        // Predicated region
        $region53: #{tpu_custom_call.1} parent=39 // pred_check
          %p1242 = pneg %p151
        $region54: #{tpu_custom_call.1} parent=39 // pred_check_branch
          %1244 = sbr.rel (%p1242) target = $region56
        $region55: #{tpu_custom_call.1} parent=39 // pred_region
          %s1245 = smul.u32 4, %s23
          %s1247 = ssub.s32 1024, 1024
          %1248 = vsyncadd %s1238, %s1247
          %s1249 = smul.addr %s1245, 2
          %s1250 = smul.addr %s1249, 128
          %s1251 = scalar_lea.hbm %s5, %s1250
          %s1252 = sshll.u32 %s1241, 4
          %s1253 = int_to_ptr.vmem [resolvable:$true] %s1252
          %1258 = dma.vmem_to_hbm [thread:$0]  %s1253, 1024, %s1251, %s1238, 128, 128, 8
        $region56: #{tpu_custom_call.1} parent=39 // pred_fallthru
          _
      $region40: #{tpu_custom_call.1} parent=5 // pred_fallthru
        _
      %p1259 = scmp.le.s32.totalorder 2, %s18
      // Predicated region
      $region57: #{tpu_custom_call.1} parent=5 // pred_check
        %p1260 = pneg %p1259
      $region58: #{tpu_custom_call.1} parent=5 // pred_check_branch
        %1262 = sbr.rel (%p1260) target = $region60
      $region59: #{tpu_custom_call.1} parent=5 // pred_region
        %s1263 = ssub.s32 %s18, 2
        // Predicated region
        $region61: #{tpu_custom_call.1} parent=59 // pred_check
          %p1264 = pneg %p157
        $region62: #{tpu_custom_call.1} parent=59 // pred_check_branch
          %1266 = sbr.rel (%p1264) target = $region64
        $region63: #{tpu_custom_call.1} parent=59 // pred_region
          %s1267 = sand.u32 %s142, 1
          %s1268 = scalar_lea.sflag [#allocation4], %s1267
          %s1269 = sand.u32 %s142, 1
          %s1270 = smul.addr %s1269, 64
          %s1271 = scalar_lea.vmem [#allocation8], %s1270
          %1272 = dma.done %s1268, 1024
        $region64: #{tpu_custom_call.1} parent=59 // pred_fallthru
          _
      $region60: #{tpu_custom_call.1} parent=5 // pred_fallthru
        _
    $region6: #{tpu_custom_call.1} parent=1 // loop_footer
      %s22 = sadd.s32 1, %s18
    $region7: #{tpu_custom_call.1} parent=1 // loop_footer_branch
      %17 = sbr.rel target = $region3
    $region8: #{tpu_custom_call.1} parent=1 // loop_exit
      _
    %1273 = vsyncpa [#allocation3], 1
    %s1274 = scalar_lea.sflag [#allocation3], 1
    %1275 = vsyncpa %s1274, 1
    %1276 = vsyncpa [#allocation6], 1
    %1277 = vsyncpa [#allocation4], 1
    %s1278 = scalar_lea.sflag [#allocation4], 1
    %1279 = vsyncpa %s1278, 1

</llo_original>
